<compile_context>
chip_gen: v7x
topology: tpu7x:2x2x1
jax: 0.10.0
libtpu: 0.0.40
codegen_flags: <defaults>
</compile_context>

<pallas_src>
import functools

import jax
import jax.numpy as jnp
from jax import lax
from jax.experimental import pallas as pl
from jax.experimental.pallas import tpu as pltpu

DIM_AUD = 76
WIN_SIZE = 16
IN_CH = 29
CONV_SHAPES = [(IN_CH, 32), (32, 32), (32, 64), (64, 64)]  # (Cin, Cout) per conv layer
LANE = 128
NEG_SLOPE = 0.02


def _leaky(v):
    return jnp.where(v >= 0, v, NEG_SLOPE * v)


def _round_up(n, m):
    return ((n + m - 1) // m) * m


def _densify_conv(w_kco, b_row, l_in):
    """Embed Conv1d(kernel=3, stride=2, padding=1) as a dense matrix.

    Acts on the per-sample channel-fastest flattened activation
    x_flat[l*Cin + c] = x[l, c], producing out_flat[t*Cout + o] = conv_out[t, o].
    Exact (up to f32 summation order): out[t] = sum_k w[k] . x[2t + k - 1], zeros OOB.
    """
    k_sz, cin, cout = w_kco.shape
    l_out = l_in // 2
    zero_blk = jnp.zeros((cin, cout), w_kco.dtype)
    rows = []
    for l in range(l_in):
        blocks = []
        for t in range(l_out):
            k = l - 2 * t + 1  # tap index such that input position l = 2t + k - 1
            blocks.append(w_kco[k] if 0 <= k < k_sz else zero_blk)
        rows.append(jnp.concatenate(blocks, axis=1))       # (Cin, L_out*Cout)
    big_w = jnp.concatenate(rows, axis=0)                  # (L_in*Cin, L_out*Cout)
    big_b = jnp.tile(b_row.reshape(1, cout), (1, l_out))   # (1, L_out*Cout)
    return big_w, big_b


def _pad2d(a, rows, cols):
    return jnp.pad(a, ((0, rows - a.shape[0]), (0, cols - a.shape[1])))


def _audionet_kernel(x_ref,
                     w1, b1, w2, b2, w3, b3, w4, b4, wf1, bf1, wf2, bf2,
                     o_ref, *, compute_dtype):
    """One batch tile per grid step: 6 dense MXU matmuls, no shuffles, no gathers."""

    def mm(h, w_ref, b_ref):
        return jnp.dot(h.astype(compute_dtype), w_ref[...].astype(compute_dtype),
                       preferred_element_type=jnp.float32) + b_ref[...]

    h = x_ref[...]                       # (B_TILE, 512)   lane-padded 16*29 -> 512
    h = _leaky(mm(h, w1, b1))            # (B_TILE, 256)   conv1 (densified)
    h = _leaky(mm(h, w2, b2))            # (B_TILE, 128)   conv2
    h = _leaky(mm(h, w3, b3))            # (B_TILE, 128)   conv3
    h = _leaky(mm(h, w4, b4))            # (B_TILE, 128)   conv4 == squeeze(-1), 64 -> 128 pad
    h = _leaky(mm(h, wf1, bf1))          # (B_TILE, 128)   fc1, 64 -> 128 pad
    h = mm(h, wf2, bf2)                  # (B_TILE, 128)   fc2, 76 -> 128 pad
    o_ref[...] = h.astype(o_ref.dtype)


def init_params(key, dim_aud=DIM_AUD):
    """Deterministic synthetic parameters (not torch init; just reproducible)."""
    keys = jax.random.split(key, 12)
    params = {"conv": [], "fc1": None, "fc2": None}
    ki = 0
    for cin, cout in CONV_SHAPES:
        # stored as (K, Cin, Cout); torch layout would be (Cout, Cin, K)
        w = 0.1 * jax.random.normal(keys[ki], (3, cin, cout), jnp.float32); ki += 1
        b = 0.01 * jax.random.normal(keys[ki], (1, cout), jnp.float32); ki += 1
        params["conv"].append((w, b))
    wf1 = 0.1 * jax.random.normal(keys[ki], (64, 64), jnp.float32); ki += 1
    bf1 = 0.01 * jax.random.normal(keys[ki], (1, 64), jnp.float32); ki += 1
    wf2 = 0.1 * jax.random.normal(keys[ki], (64, dim_aud), jnp.float32); ki += 1
    bf2 = 0.01 * jax.random.normal(keys[ki], (1, dim_aud), jnp.float32); ki += 1
    params["fc1"] = (wf1, bf1)
    params["fc2"] = (wf2, bf2)
    return params


def audionet_forward(x, params, dim_aud=DIM_AUD, win_size=WIN_SIZE,
                     batch_tile=256, compute_dtype=jnp.float32):
    half_w = win_size // 2
    xw = x[:, 8 - half_w: 8 + half_w, :]              # (B, 16, 29)
    B = xw.shape[0]
    flat_in = win_size * IN_CH

    # Densify the four strided convs into dense matrices; collect raw (W, b) per layer.
    raw = []
    dims = [flat_in]
    l_in = win_size
    for w, b in params["conv"]:
        bw, bb = _densify_conv(w, b, l_in)
        raw.append((bw, bb))
        dims.append(bw.shape[1])
        l_in //= 2
    wf1, bf1 = params["fc1"]
    wf2, bf2 = params["fc2"]
    raw.append((wf1, bf1)); dims.append(wf1.shape[1])
    raw.append((wf2, bf2)); dims.append(wf2.shape[1])

    # Lane-pad every activation width to a multiple of 128 (exact: zero rows/cols,
    # LeakyReLU(0) = 0, padded lanes stay zero end-to-end).
    pdims = [_round_up(d, LANE) for d in dims]         # [512, 256, 128, 128, 128, 128, 128]
    flat_params = []
    for i, (w, b) in enumerate(raw):
        flat_params.append(_pad2d(w, pdims[i], pdims[i + 1]))
        flat_params.append(_pad2d(b, 1, pdims[i + 1]))

    # Batch tiling: sublane-aligned tile, batch padded to a tile multiple.
    bt = min(_round_up(batch_tile, 8), _round_up(max(B, 1), 8))
    b_pad = _round_up(B, bt)
    x_flat = xw.reshape(B, flat_in)
    x_flat = jnp.pad(x_flat, ((0, b_pad - B), (0, pdims[0] - flat_in)))

    def _const_spec(a):
        # Full-array block, constant index -> stays VMEM-resident across the grid.
        nd = a.ndim
        return pl.BlockSpec(a.shape, lambda i, _nd=nd: (0,) * _nd)

    in_specs = [pl.BlockSpec((bt, pdims[0]), lambda i: (i, 0))]
    in_specs += [_const_spec(a) for a in flat_params]

    kernel = functools.partial(_audionet_kernel, compute_dtype=compute_dtype)
    out = pl.pallas_call(
        kernel,
        out_shape=jax.ShapeDtypeStruct((b_pad, pdims[-1]), jnp.float32),
        grid=(b_pad // bt,),
        in_specs=in_specs,
        out_specs=pl.BlockSpec((bt, pdims[-1]), lambda i: (i, 0)),
        compiler_params=pltpu.CompilerParams(dimension_semantics=("parallel",)),
    )(x_flat, *flat_params)

    out = out[:B, :dim_aud]
    return jnp.squeeze(out)   # mirrors torch .squeeze()


def ref_forward(x, params, dim_aud=DIM_AUD, win_size=WIN_SIZE):
    """Pure-JAX reference mirroring the PyTorch forward exactly (NCW convs)."""
    half_w = win_size // 2
    xw = x[:, 8 - half_w: 8 + half_w, :]
    h = jnp.transpose(xw, (0, 2, 1))                      # (B, 29, 16) NCW
    for w, b in params["conv"]:
        w_oih = jnp.transpose(w, (2, 1, 0))               # (Cout, Cin, K)
        h = lax.conv_general_dilated(
            h, w_oih, window_strides=(2,), padding=((1, 1),),
            dimension_numbers=("NCH", "OIH", "NCH"),
            precision=lax.Precision.HIGHEST)
        h = h + b.reshape(1, -1, 1)
        h = _leaky(h)
    h = h[:, :, 0]                                        # squeeze(-1)
    wf1, bf1 = params["fc1"]
    wf2, bf2 = params["fc2"]
    h = _leaky(h @ wf1 + bf1)
    h = h @ wf2 + bf2
    return jnp.squeeze(h)


if __name__ == "__main__":
    key = jax.random.PRNGKey(0)
    k_param, k_x = jax.random.split(key)
    params = init_params(k_param)

    B = 2
    x = jax.random.normal(k_x, (B, WIN_SIZE, IN_CH), jnp.float32)  # (2, 16, 29)

    out = audionet_forward(x, params)            # f32 path (safe on all generations)
    out = jax.block_until_ready(out)

    ref = jax.block_until_ready(ref_forward(x, params))

    assert out.shape == (B, DIM_AUD), out.shape
    max_err = float(jnp.max(jnp.abs(out - ref)))
    assert max_err < 5e-2, f"max abs error {max_err}"

    print("KERNEL_OK")
</pallas_src>

<mosaic_0001>
module attributes {stable_mosaic.version = 11 : i64} {
  func.func @_audionet_kernel(%arg0: i32, %arg1: memref<8x512xf32, #tpu.memory_space<vmem>>, %arg2: memref<512x256xf32, #tpu.memory_space<vmem>>, %arg3: memref<1x256xf32, #tpu.memory_space<vmem>>, %arg4: memref<256x128xf32, #tpu.memory_space<vmem>>, %arg5: memref<1x128xf32, #tpu.memory_space<vmem>>, %arg6: memref<128x128xf32, #tpu.memory_space<vmem>>, %arg7: memref<1x128xf32, #tpu.memory_space<vmem>>, %arg8: memref<128x128xf32, #tpu.memory_space<vmem>>, %arg9: memref<1x128xf32, #tpu.memory_space<vmem>>, %arg10: memref<128x128xf32, #tpu.memory_space<vmem>>, %arg11: memref<1x128xf32, #tpu.memory_space<vmem>>, %arg12: memref<128x128xf32, #tpu.memory_space<vmem>>, %arg13: memref<1x128xf32, #tpu.memory_space<vmem>>, %arg14: memref<8x128xf32, #tpu.memory_space<vmem>>) attributes {dimension_semantics = [#tpu.dimension_semantics<parallel>], iteration_bounds = array<i64: 1>, scalar_prefetch = 0 : i64, scratch_operands = 0 : i64, tpu.core_type = #tpu.core_type<tc>, window_params = [{transform_indices = @transform_0, window_bounds = array<i64: 8, 512>}, {pipeline_mode = #tpu.pipeline_mode<synchronous>, transform_indices = @transform_1, window_bounds = array<i64: 512, 256>}, {pipeline_mode = #tpu.pipeline_mode<synchronous>, transform_indices = @transform_2, window_bounds = array<i64: 1, 256>}, {pipeline_mode = #tpu.pipeline_mode<synchronous>, transform_indices = @transform_3, window_bounds = array<i64: 256, 128>}, {pipeline_mode = #tpu.pipeline_mode<synchronous>, transform_indices = @transform_4, window_bounds = array<i64: 1, 128>}, {pipeline_mode = #tpu.pipeline_mode<synchronous>, transform_indices = @transform_5, window_bounds = array<i64: 128, 128>}, {pipeline_mode = #tpu.pipeline_mode<synchronous>, transform_indices = @transform_6, window_bounds = array<i64: 1, 128>}, {pipeline_mode = #tpu.pipeline_mode<synchronous>, transform_indices = @transform_7, window_bounds = array<i64: 128, 128>}, {pipeline_mode = #tpu.pipeline_mode<synchronous>, transform_indices = @transform_8, window_bounds = array<i64: 1, 128>}, {pipeline_mode = #tpu.pipeline_mode<synchronous>, transform_indices = @transform_9, window_bounds = array<i64: 128, 128>}, {pipeline_mode = #tpu.pipeline_mode<synchronous>, transform_indices = @transform_10, window_bounds = array<i64: 1, 128>}, {pipeline_mode = #tpu.pipeline_mode<synchronous>, transform_indices = @transform_11, window_bounds = array<i64: 128, 128>}, {pipeline_mode = #tpu.pipeline_mode<synchronous>, transform_indices = @transform_12, window_bounds = array<i64: 1, 128>}, {transform_indices = @transform_13, window_bounds = array<i64: 8, 128>}]} {
    %c0 = arith.constant 0 : index
    %c0_0 = arith.constant 0 : index
    %0 = vector.load %arg1[%c0, %c0_0] : memref<8x512xf32, #tpu.memory_space<vmem>>, vector<8x512xf32>
    %c0_1 = arith.constant 0 : index
    %c0_2 = arith.constant 0 : index
    %1 = vector.load %arg2[%c0_1, %c0_2] : memref<512x256xf32, #tpu.memory_space<vmem>>, vector<512x256xf32>
    %cst = arith.constant dense<0.000000e+00> : vector<8x256xf32>
    %2 = tpu.matmul %0, %1, %cst {dimension_numbers = #tpu.dot_dimension_numbers<[1], [0], [0], [1], [0, 0, 1, 1], [], []>} : vector<8x512xf32>, vector<512x256xf32>, vector<8x256xf32> -> vector<8x256xf32>
    %c0_3 = arith.constant 0 : index
    %c0_4 = arith.constant 0 : index
    %3 = vector.load %arg3[%c0_3, %c0_4] : memref<1x256xf32, #tpu.memory_space<vmem>>, vector<1x256xf32>
    %4 = vector.broadcast %3 : vector<1x256xf32> to vector<8x256xf32>
    %5 = arith.addf %2, %4 : vector<8x256xf32>
    %cst_5 = arith.constant 0.000000e+00 : f32
    %6 = vector.broadcast %cst_5 : f32 to vector<8x256xf32>
    %7 = arith.cmpf oge, %5, %6 : vector<8x256xf32>
    %cst_6 = arith.constant 2.000000e-02 : f32
    %8 = vector.broadcast %cst_6 : f32 to vector<8x256xf32>
    %9 = arith.mulf %8, %5 : vector<8x256xf32>
    %10 = arith.select %7, %5, %9 : vector<8x256xi1>, vector<8x256xf32>
    %c0_7 = arith.constant 0 : index
    %c0_8 = arith.constant 0 : index
    %11 = vector.load %arg4[%c0_7, %c0_8] : memref<256x128xf32, #tpu.memory_space<vmem>>, vector<256x128xf32>
    %cst_9 = arith.constant dense<0.000000e+00> : vector<8x128xf32>
    %12 = tpu.matmul %10, %11, %cst_9 {dimension_numbers = #tpu.dot_dimension_numbers<[1], [0], [0], [1], [0, 0, 1, 1], [], []>} : vector<8x256xf32>, vector<256x128xf32>, vector<8x128xf32> -> vector<8x128xf32>
    %c0_10 = arith.constant 0 : index
    %c0_11 = arith.constant 0 : index
    %13 = vector.load %arg5[%c0_10, %c0_11] : memref<1x128xf32, #tpu.memory_space<vmem>>, vector<1x128xf32>
    %14 = vector.broadcast %13 : vector<1x128xf32> to vector<8x128xf32>
    %15 = arith.addf %12, %14 : vector<8x128xf32>
    %cst_12 = arith.constant 0.000000e+00 : f32
    %16 = vector.broadcast %cst_12 : f32 to vector<8x128xf32>
    %17 = arith.cmpf oge, %15, %16 : vector<8x128xf32>
    %cst_13 = arith.constant 2.000000e-02 : f32
    %18 = vector.broadcast %cst_13 : f32 to vector<8x128xf32>
    %19 = arith.mulf %18, %15 : vector<8x128xf32>
    %20 = arith.select %17, %15, %19 : vector<8x128xi1>, vector<8x128xf32>
    %c0_14 = arith.constant 0 : index
    %c0_15 = arith.constant 0 : index
    %21 = vector.load %arg6[%c0_14, %c0_15] : memref<128x128xf32, #tpu.memory_space<vmem>>, vector<128x128xf32>
    %cst_16 = arith.constant dense<0.000000e+00> : vector<8x128xf32>
    %22 = tpu.matmul %20, %21, %cst_16 {dimension_numbers = #tpu.dot_dimension_numbers<[1], [0], [0], [1], [0, 0, 1, 1], [], []>} : vector<8x128xf32>, vector<128x128xf32>, vector<8x128xf32> -> vector<8x128xf32>
    %c0_17 = arith.constant 0 : index
    %c0_18 = arith.constant 0 : index
    %23 = vector.load %arg7[%c0_17, %c0_18] : memref<1x128xf32, #tpu.memory_space<vmem>>, vector<1x128xf32>
    %24 = vector.broadcast %23 : vector<1x128xf32> to vector<8x128xf32>
    %25 = arith.addf %22, %24 : vector<8x128xf32>
    %cst_19 = arith.constant 0.000000e+00 : f32
    %26 = vector.broadcast %cst_19 : f32 to vector<8x128xf32>
    %27 = arith.cmpf oge, %25, %26 : vector<8x128xf32>
    %cst_20 = arith.constant 2.000000e-02 : f32
    %28 = vector.broadcast %cst_20 : f32 to vector<8x128xf32>
    %29 = arith.mulf %28, %25 : vector<8x128xf32>
    %30 = arith.select %27, %25, %29 : vector<8x128xi1>, vector<8x128xf32>
    %c0_21 = arith.constant 0 : index
    %c0_22 = arith.constant 0 : index
    %31 = vector.load %arg8[%c0_21, %c0_22] : memref<128x128xf32, #tpu.memory_space<vmem>>, vector<128x128xf32>
    %cst_23 = arith.constant dense<0.000000e+00> : vector<8x128xf32>
    %32 = tpu.matmul %30, %31, %cst_23 {dimension_numbers = #tpu.dot_dimension_numbers<[1], [0], [0], [1], [0, 0, 1, 1], [], []>} : vector<8x128xf32>, vector<128x128xf32>, vector<8x128xf32> -> vector<8x128xf32>
    %c0_24 = arith.constant 0 : index
    %c0_25 = arith.constant 0 : index
    %33 = vector.load %arg9[%c0_24, %c0_25] : memref<1x128xf32, #tpu.memory_space<vmem>>, vector<1x128xf32>
    %34 = vector.broadcast %33 : vector<1x128xf32> to vector<8x128xf32>
    %35 = arith.addf %32, %34 : vector<8x128xf32>
    %cst_26 = arith.constant 0.000000e+00 : f32
    %36 = vector.broadcast %cst_26 : f32 to vector<8x128xf32>
    %37 = arith.cmpf oge, %35, %36 : vector<8x128xf32>
    %cst_27 = arith.constant 2.000000e-02 : f32
    %38 = vector.broadcast %cst_27 : f32 to vector<8x128xf32>
    %39 = arith.mulf %38, %35 : vector<8x128xf32>
    %40 = arith.select %37, %35, %39 : vector<8x128xi1>, vector<8x128xf32>
    %c0_28 = arith.constant 0 : index
    %c0_29 = arith.constant 0 : index
    %41 = vector.load %arg10[%c0_28, %c0_29] : memref<128x128xf32, #tpu.memory_space<vmem>>, vector<128x128xf32>
    %cst_30 = arith.constant dense<0.000000e+00> : vector<8x128xf32>
    %42 = tpu.matmul %40, %41, %cst_30 {dimension_numbers = #tpu.dot_dimension_numbers<[1], [0], [0], [1], [0, 0, 1, 1], [], []>} : vector<8x128xf32>, vector<128x128xf32>, vector<8x128xf32> -> vector<8x128xf32>
    %c0_31 = arith.constant 0 : index
    %c0_32 = arith.constant 0 : index
    %43 = vector.load %arg11[%c0_31, %c0_32] : memref<1x128xf32, #tpu.memory_space<vmem>>, vector<1x128xf32>
    %44 = vector.broadcast %43 : vector<1x128xf32> to vector<8x128xf32>
    %45 = arith.addf %42, %44 : vector<8x128xf32>
    %cst_33 = arith.constant 0.000000e+00 : f32
    %46 = vector.broadcast %cst_33 : f32 to vector<8x128xf32>
    %47 = arith.cmpf oge, %45, %46 : vector<8x128xf32>
    %cst_34 = arith.constant 2.000000e-02 : f32
    %48 = vector.broadcast %cst_34 : f32 to vector<8x128xf32>
    %49 = arith.mulf %48, %45 : vector<8x128xf32>
    %50 = arith.select %47, %45, %49 : vector<8x128xi1>, vector<8x128xf32>
    %c0_35 = arith.constant 0 : index
    %c0_36 = arith.constant 0 : index
    %51 = vector.load %arg12[%c0_35, %c0_36] : memref<128x128xf32, #tpu.memory_space<vmem>>, vector<128x128xf32>
    %cst_37 = arith.constant dense<0.000000e+00> : vector<8x128xf32>
    %52 = tpu.matmul %50, %51, %cst_37 {dimension_numbers = #tpu.dot_dimension_numbers<[1], [0], [0], [1], [0, 0, 1, 1], [], []>} : vector<8x128xf32>, vector<128x128xf32>, vector<8x128xf32> -> vector<8x128xf32>
    %c0_38 = arith.constant 0 : index
    %c0_39 = arith.constant 0 : index
    %53 = vector.load %arg13[%c0_38, %c0_39] : memref<1x128xf32, #tpu.memory_space<vmem>>, vector<1x128xf32>
    %54 = vector.broadcast %53 : vector<1x128xf32> to vector<8x128xf32>
    %55 = arith.addf %52, %54 : vector<8x128xf32>
    %c0_40 = arith.constant 0 : index
    %c0_41 = arith.constant 0 : index
    %56 = vector.load %arg14[%c0_40, %c0_41] : memref<8x128xf32, #tpu.memory_space<vmem>>, vector<8x128xf32>
    tpu.vector_store %arg14[%c0_40, %c0_41], %55 {strides = array<i32>} : memref<8x128xf32, #tpu.memory_space<vmem>>, vector<8x128xf32>,
    return
  }
  func.func @transform_0(%arg0: i32) -> (i32, i32) {
    %c0_i32 = arith.constant 0 : i32
    %c0_i32_0 = arith.constant 0 : i32
    return %arg0, %c0_i32 : i32, i32
  }
  func.func @transform_1(%arg0: i32) -> (i32, i32) {
    %c0_i32 = arith.constant 0 : i32
    %c0_i32_0 = arith.constant 0 : i32
    %c0_i32_1 = arith.constant 0 : i32
    return %c0_i32, %c0_i32_0 : i32, i32
  }
  func.func @transform_2(%arg0: i32) -> (i32, i32) {
    %c0_i32 = arith.constant 0 : i32
    %c0_i32_0 = arith.constant 0 : i32
    %c0_i32_1 = arith.constant 0 : i32
    return %c0_i32, %c0_i32_0 : i32, i32
  }
  func.func @transform_3(%arg0: i32) -> (i32, i32) {
    %c0_i32 = arith.constant 0 : i32
    %c0_i32_0 = arith.constant 0 : i32
    %c0_i32_1 = arith.constant 0 : i32
    return %c0_i32, %c0_i32_0 : i32, i32
  }
  func.func @transform_4(%arg0: i32) -> (i32, i32) {
    %c0_i32 = arith.constant 0 : i32
    %c0_i32_0 = arith.constant 0 : i32
    %c0_i32_1 = arith.constant 0 : i32
    return %c0_i32, %c0_i32_0 : i32, i32
  }
  func.func @transform_5(%arg0: i32) -> (i32, i32) {
    %c0_i32 = arith.constant 0 : i32
    %c0_i32_0 = arith.constant 0 : i32
    %c0_i32_1 = arith.constant 0 : i32
    return %c0_i32, %c0_i32_0 : i32, i32
  }
  func.func @transform_6(%arg0: i32) -> (i32, i32) {
    %c0_i32 = arith.constant 0 : i32
    %c0_i32_0 = arith.constant 0 : i32
    %c0_i32_1 = arith.constant 0 : i32
    return %c0_i32, %c0_i32_0 : i32, i32
  }
  func.func @transform_7(%arg0: i32) -> (i32, i32) {
    %c0_i32 = arith.constant 0 : i32
    %c0_i32_0 = arith.constant 0 : i32
    %c0_i32_1 = arith.constant 0 : i32
    return %c0_i32, %c0_i32_0 : i32, i32
  }
  func.func @transform_8(%arg0: i32) -> (i32, i32) {
    %c0_i32 = arith.constant 0 : i32
    %c0_i32_0 = arith.constant 0 : i32
    %c0_i32_1 = arith.constant 0 : i32
    return %c0_i32, %c0_i32_0 : i32, i32
  }
  func.func @transform_9(%arg0: i32) -> (i32, i32) {
    %c0_i32 = arith.constant 0 : i32
    %c0_i32_0 = arith.constant 0 : i32
    %c0_i32_1 = arith.constant 0 : i32
    return %c0_i32, %c0_i32_0 : i32, i32
  }
  func.func @transform_10(%arg0: i32) -> (i32, i32) {
    %c0_i32 = arith.constant 0 : i32
    %c0_i32_0 = arith.constant 0 : i32
    %c0_i32_1 = arith.constant 0 : i32
    return %c0_i32, %c0_i32_0 : i32, i32
  }
  func.func @transform_11(%arg0: i32) -> (i32, i32) {
    %c0_i32 = arith.constant 0 : i32
    %c0_i32_0 = arith.constant 0 : i32
    %c0_i32_1 = arith.constant 0 : i32
    return %c0_i32, %c0_i32_0 : i32, i32
  }
  func.func @transform_12(%arg0: i32) -> (i32, i32) {
    %c0_i32 = arith.constant 0 : i32
    %c0_i32_0 = arith.constant 0 : i32
    %c0_i32_1 = arith.constant 0 : i32
    return %c0_i32, %c0_i32_0 : i32, i32
  }
  func.func @transform_13(%arg0: i32) -> (i32, i32) {
    %c0_i32 = arith.constant 0 : i32
    %c0_i32_0 = arith.constant 0 : i32
    return %arg0, %c0_i32 : i32, i32
  }
}

</mosaic_0001>

<llo_original>
// kernel: tpu_custom_call.1
$region0: #{tpu_custom_call.1}
  #allocation0 [shape = 'u32[]', space=smem, size = 0x4, offset = 0x4, fixed_abs, tag = 'smem constant byte address 0x4 - core index']
  #allocation1 [shape = 'u32[144,128]{1,0:T(1,128)}', space=vmem, size = 0x12000, scoped, tag = 'internal scratch']
  %s0 = inlined_call_operand.hbm [shape: f32[8,512], index: 0, kind: input, shape index: {}]
  %s1 = inlined_call_operand.hbm [shape: f32[512,256], index: 1, kind: input, shape index: {}]
  %s2 = inlined_call_operand.vmem [shape: f32[1,256], index: 2, kind: input, shape index: {}]
  %s3 = inlined_call_operand.hbm [shape: f32[256,128], index: 3, kind: input, shape index: {}]
  %s4 = inlined_call_operand.vmem [shape: f32[1,128], index: 4, kind: input, shape index: {}]
  %s5 = inlined_call_operand.hbm [shape: f32[128,128], index: 5, kind: input, shape index: {}]
  %s6 = inlined_call_operand.vmem [shape: f32[1,128], index: 6, kind: input, shape index: {}]
  %s7 = inlined_call_operand.hbm [shape: f32[128,128], index: 7, kind: input, shape index: {}]
  %s8 = inlined_call_operand.vmem [shape: f32[1,128], index: 8, kind: input, shape index: {}]
  %s9 = inlined_call_operand.hbm [shape: f32[128,128], index: 9, kind: input, shape index: {}]
  %s10 = inlined_call_operand.vmem [shape: f32[1,128], index: 10, kind: input, shape index: {}]
  %s11 = inlined_call_operand.hbm [shape: f32[128,128], index: 11, kind: input, shape index: {}]
  %s12 = inlined_call_operand.vmem [shape: f32[1,128], index: 12, kind: input, shape index: {}]
  %s13 = inlined_call_operand.hbm [shape: f32[8,128], index: 13, kind: output, shape index: {}]
  %s14 = sld [smem:[#allocation0]]
  $region90: #{tpu_custom_call.1} parent=0
    _
  %s16 = ssub.s32 1, %s14
  %s17 = scalar_select 0, %s16, %s14
  $region1: #{tpu_custom_call.1} parent=0
    #allocation2 [shape = 'u8[16384]{0}', space=vmem, size = 0x4000, scoped, tag = 'input window, operand 0, single buffered']
    #allocation3 [shape = 's32[1]{0}', space=sflag, size = 0x4, scoped, tag = 'scoped memory for tpu_custom_call.1']
    #allocation4 [shape = 's32[1]{0}', space=sflag, size = 0x4, scoped, tag = 'scoped memory for tpu_custom_call.1']
    #allocation5 [shape = 'u8[524288]{0}', space=vmem, size = 0x80000, scoped, tag = 'input window, operand 1, single buffered']
    #allocation6 [shape = 's32[1]{0}', space=sflag, size = 0x4, scoped, tag = 'scoped memory for tpu_custom_call.1']
    #allocation7 [shape = 'u8[131072]{0}', space=vmem, size = 0x20000, scoped, tag = 'input window, operand 3, single buffered']
    #allocation8 [shape = 'u8[65536]{0}', space=vmem, size = 0x10000, scoped, tag = 'input window, operand 5, single buffered']
    #allocation9 [shape = 's32[1]{0}', space=sflag, size = 0x4, scoped, tag = 'scoped memory for tpu_custom_call.1']
    #allocation10 [shape = 'u8[65536]{0}', space=vmem, size = 0x10000, scoped, tag = 'input window, operand 7, single buffered']
    #allocation11 [shape = 'u8[65536]{0}', space=vmem, size = 0x10000, scoped, tag = 'input window, operand 9, single buffered']
    #allocation12 [shape = 's32[1]{0}', space=sflag, size = 0x4, scoped, tag = 'scoped memory for tpu_custom_call.1']
    #allocation13 [shape = 'u8[65536]{0}', space=vmem, size = 0x10000, scoped, tag = 'input window, operand 11, single buffered']
    #allocation14 [shape = 'u8[4096]{0}', space=vmem, size = 0x1000, scoped, tag = 'output window, operand 0, single buffered']
    %18 = vsyncpa [#allocation3], 0
    %19 = vsyncpa [#allocation6], 0
    %20 = vsyncpa [#allocation9], 0
    %21 = vsyncpa [#allocation12], 0
    %22 = vsyncpa [#allocation4], 0
    // Predicated region
    $region2: #{tpu_custom_call.1} parent=1 // pred_check
      _
    $region3: #{tpu_custom_call.1} parent=1 // pred_check_branch
      %24 = sbr.rel (0) target = $region5
    $region4: #{tpu_custom_call.1} parent=1 // pred_region
      %s26 = ssub.s32 512, 512
      %27 = vsyncadd [#allocation3], %s26
      %s29 = sshll.u32 [#allocation2], 4
      %s30 = int_to_ptr.vmem [resolvable:$true] %s29
      %32 = dma.hbm_to_vmem [thread:$0]  %s0, 512, %s30, [#allocation3]
    $region5: #{tpu_custom_call.1} parent=1 // pred_fallthru
      _
    // Predicated region
    $region6: #{tpu_custom_call.1} parent=1 // pred_check
      _
    $region7: #{tpu_custom_call.1} parent=1 // pred_check_branch
      %34 = sbr.rel (0) target = $region9
    $region8: #{tpu_custom_call.1} parent=1 // pred_region
      %s36 = ssub.s32 16384, 16384
      %37 = vsyncadd [#allocation6], %s36
      %s38 = sshll.u32 [#allocation5], 4
      %s39 = int_to_ptr.vmem [resolvable:$true] %s38
      %44 = dma.hbm_to_vmem [thread:$0]  %s1, 16384, %s39, [#allocation6], 256, 256, 16
    $region9: #{tpu_custom_call.1} parent=1 // pred_fallthru
      _
    // Predicated region
    $region10: #{tpu_custom_call.1} parent=1 // pred_check
      _
    $region11: #{tpu_custom_call.1} parent=1 // pred_check_branch
      %46 = sbr.rel (0) target = $region13
    $region12: #{tpu_custom_call.1} parent=1 // pred_region
      _
    $region13: #{tpu_custom_call.1} parent=1 // pred_fallthru
      _
    // Predicated region
    $region14: #{tpu_custom_call.1} parent=1 // pred_check
      _
    $region15: #{tpu_custom_call.1} parent=1 // pred_check_branch
      %48 = sbr.rel (0) target = $region17
    $region16: #{tpu_custom_call.1} parent=1 // pred_region
      %s50 = ssub.s32 4096, 4096
      %51 = vsyncadd [#allocation6], %s50
      %s52 = sshll.u32 [#allocation7], 4
      %s53 = int_to_ptr.vmem [resolvable:$true] %s52
      %58 = dma.hbm_to_vmem [thread:$0]  %s3, 4096, %s53, [#allocation6], 128, 128, 8
    $region17: #{tpu_custom_call.1} parent=1 // pred_fallthru
      _
    // Predicated region
    $region18: #{tpu_custom_call.1} parent=1 // pred_check
      _
    $region19: #{tpu_custom_call.1} parent=1 // pred_check_branch
      %60 = sbr.rel (0) target = $region21
    $region20: #{tpu_custom_call.1} parent=1 // pred_region
      _
    $region21: #{tpu_custom_call.1} parent=1 // pred_fallthru
      _
    // Predicated region
    $region22: #{tpu_custom_call.1} parent=1 // pred_check
      _
    $region23: #{tpu_custom_call.1} parent=1 // pred_check_branch
      %62 = sbr.rel (0) target = $region25
    $region24: #{tpu_custom_call.1} parent=1 // pred_region
      %s64 = ssub.s32 2048, 2048
      %65 = vsyncadd [#allocation9], %s64
      %s66 = sshll.u32 [#allocation8], 4
      %s67 = int_to_ptr.vmem [resolvable:$true] %s66
      %72 = dma.hbm_to_vmem [thread:$0]  %s5, 2048, %s67, [#allocation9], 128, 128, 8
    $region25: #{tpu_custom_call.1} parent=1 // pred_fallthru
      _
    // Predicated region
    $region26: #{tpu_custom_call.1} parent=1 // pred_check
      _
    $region27: #{tpu_custom_call.1} parent=1 // pred_check_branch
      %74 = sbr.rel (0) target = $region29
    $region28: #{tpu_custom_call.1} parent=1 // pred_region
      _
    $region29: #{tpu_custom_call.1} parent=1 // pred_fallthru
      _
    // Predicated region
    $region30: #{tpu_custom_call.1} parent=1 // pred_check
      _
    $region31: #{tpu_custom_call.1} parent=1 // pred_check_branch
      %76 = sbr.rel (0) target = $region33
    $region32: #{tpu_custom_call.1} parent=1 // pred_region
      %s78 = ssub.s32 2048, 2048
      %79 = vsyncadd [#allocation9], %s78
      %s80 = sshll.u32 [#allocation10], 4
      %s81 = int_to_ptr.vmem [resolvable:$true] %s80
      %86 = dma.hbm_to_vmem [thread:$0]  %s7, 2048, %s81, [#allocation9], 128, 128, 8
    $region33: #{tpu_custom_call.1} parent=1 // pred_fallthru
      _
    // Predicated region
    $region34: #{tpu_custom_call.1} parent=1 // pred_check
      _
    $region35: #{tpu_custom_call.1} parent=1 // pred_check_branch
      %88 = sbr.rel (0) target = $region37
    $region36: #{tpu_custom_call.1} parent=1 // pred_region
      _
    $region37: #{tpu_custom_call.1} parent=1 // pred_fallthru
      _
    // Predicated region
    $region38: #{tpu_custom_call.1} parent=1 // pred_check
      _
    $region39: #{tpu_custom_call.1} parent=1 // pred_check_branch
      %90 = sbr.rel (0) target = $region41
    $region40: #{tpu_custom_call.1} parent=1 // pred_region
      %s92 = ssub.s32 2048, 2048
      %93 = vsyncadd [#allocation12], %s92
      %s94 = sshll.u32 [#allocation11], 4
      %s95 = int_to_ptr.vmem [resolvable:$true] %s94
      %100 = dma.hbm_to_vmem [thread:$0]  %s9, 2048, %s95, [#allocation12], 128, 128, 8
    $region41: #{tpu_custom_call.1} parent=1 // pred_fallthru
      _
    // Predicated region
    $region42: #{tpu_custom_call.1} parent=1 // pred_check
      _
    $region43: #{tpu_custom_call.1} parent=1 // pred_check_branch
      %102 = sbr.rel (0) target = $region45
    $region44: #{tpu_custom_call.1} parent=1 // pred_region
      _
    $region45: #{tpu_custom_call.1} parent=1 // pred_fallthru
      _
    // Predicated region
    $region46: #{tpu_custom_call.1} parent=1 // pred_check
      _
    $region47: #{tpu_custom_call.1} parent=1 // pred_check_branch
      %104 = sbr.rel (0) target = $region49
    $region48: #{tpu_custom_call.1} parent=1 // pred_region
      %s106 = ssub.s32 2048, 2048
      %107 = vsyncadd [#allocation12], %s106
      %s108 = sshll.u32 [#allocation13], 4
      %s109 = int_to_ptr.vmem [resolvable:$true] %s108
      %114 = dma.hbm_to_vmem [thread:$0]  %s11, 2048, %s109, [#allocation12], 128, 128, 8
    $region49: #{tpu_custom_call.1} parent=1 // pred_fallthru
      _
    // Predicated region
    $region50: #{tpu_custom_call.1} parent=1 // pred_check
      _
    $region51: #{tpu_custom_call.1} parent=1 // pred_check_branch
      %116 = sbr.rel (0) target = $region53
    $region52: #{tpu_custom_call.1} parent=1 // pred_region
      _
    $region53: #{tpu_custom_call.1} parent=1 // pred_fallthru
      _
    // Predicated region
    $region54: #{tpu_custom_call.1} parent=1 // pred_check
      _
    $region55: #{tpu_custom_call.1} parent=1 // pred_check_branch
      %118 = sbr.rel (0) target = $region57
    $region56: #{tpu_custom_call.1} parent=1 // pred_region
      %119 = dma.done [#allocation3], 512
    $region57: #{tpu_custom_call.1} parent=1 // pred_fallthru
      _
    // Predicated region
    $region58: #{tpu_custom_call.1} parent=1 // pred_check
      _
    $region59: #{tpu_custom_call.1} parent=1 // pred_check_branch
      %121 = sbr.rel (0) target = $region61
    $region60: #{tpu_custom_call.1} parent=1 // pred_region
      %122 = dma.done [#allocation6], 16384
    $region61: #{tpu_custom_call.1} parent=1 // pred_fallthru
      _
    // Predicated region
    $region62: #{tpu_custom_call.1} parent=1 // pred_check
      _
    $region63: #{tpu_custom_call.1} parent=1 // pred_check_branch
      %124 = sbr.rel (0) target = $region65
    $region64: #{tpu_custom_call.1} parent=1 // pred_region
      %125 = dma.done [#allocation6], 4096
    $region65: #{tpu_custom_call.1} parent=1 // pred_fallthru
      _
    // Predicated region
    $region66: #{tpu_custom_call.1} parent=1 // pred_check
      _
    $region67: #{tpu_custom_call.1} parent=1 // pred_check_branch
      %127 = sbr.rel (0) target = $region69
    $region68: #{tpu_custom_call.1} parent=1 // pred_region
      %128 = dma.done [#allocation9], 2048
    $region69: #{tpu_custom_call.1} parent=1 // pred_fallthru
      _
    // Predicated region
    $region70: #{tpu_custom_call.1} parent=1 // pred_check
      _
    $region71: #{tpu_custom_call.1} parent=1 // pred_check_branch
      %130 = sbr.rel (0) target = $region73
    $region72: #{tpu_custom_call.1} parent=1 // pred_region
      %131 = dma.done [#allocation9], 2048
    $region73: #{tpu_custom_call.1} parent=1 // pred_fallthru
      _
    // Predicated region
    $region74: #{tpu_custom_call.1} parent=1 // pred_check
      _
    $region75: #{tpu_custom_call.1} parent=1 // pred_check_branch
      %133 = sbr.rel (0) target = $region77
    $region76: #{tpu_custom_call.1} parent=1 // pred_region
      %134 = dma.done [#allocation12], 2048
    $region77: #{tpu_custom_call.1} parent=1 // pred_fallthru
      _
    // Predicated region
    $region78: #{tpu_custom_call.1} parent=1 // pred_check
      _
    $region79: #{tpu_custom_call.1} parent=1 // pred_check_branch
      %136 = sbr.rel (0) target = $region81
    $region80: #{tpu_custom_call.1} parent=1 // pred_region
      %137 = dma.done [#allocation12], 2048
    $region81: #{tpu_custom_call.1} parent=1 // pred_fallthru
      _
    %v138 = vld [vmem:[#allocation2] sm:$0xff]
    %v139 = vld [vmem:[#allocation2 + $0x8] sm:$0xff]
    %v140 = vld [vmem:[#allocation2 + $0x10] sm:$0xff]
    %v141 = vld [vmem:[#allocation2 + $0x18] sm:$0xff]
    %v142 = vld [vmem:[#allocation5] sm:$0xff]
    %v143 = vld [vmem:[#allocation5 + $0x8] sm:$0xff]
    %v144 = vld [vmem:[#allocation5 + $0x10] sm:$0xff]
    %v145 = vld [vmem:[#allocation5 + $0x18] sm:$0xff]
    %v146 = vld [vmem:[#allocation5 + $0x20] sm:$0xff]
    %v147 = vld [vmem:[#allocation5 + $0x28] sm:$0xff]
    %v148 = vld [vmem:[#allocation5 + $0x30] sm:$0xff]
    %v149 = vld [vmem:[#allocation5 + $0x38] sm:$0xff]
    %v150 = vld [vmem:[#allocation5 + $0x40] sm:$0xff]
    %v151 = vld [vmem:[#allocation5 + $0x48] sm:$0xff]
    %v152 = vld [vmem:[#allocation5 + $0x50] sm:$0xff]
    %v153 = vld [vmem:[#allocation5 + $0x58] sm:$0xff]
    %v154 = vld [vmem:[#allocation5 + $0x60] sm:$0xff]
    %v155 = vld [vmem:[#allocation5 + $0x68] sm:$0xff]
    %v156 = vld [vmem:[#allocation5 + $0x70] sm:$0xff]
    %v157 = vld [vmem:[#allocation5 + $0x78] sm:$0xff]
    %v158 = vld [vmem:[#allocation5 + $0x80] sm:$0xff]
    %v159 = vld [vmem:[#allocation5 + $0x88] sm:$0xff]
    %v160 = vld [vmem:[#allocation5 + $0x90] sm:$0xff]
    %v161 = vld [vmem:[#allocation5 + $0x98] sm:$0xff]
    %v162 = vld [vmem:[#allocation5 + $0xa0] sm:$0xff]
    %v163 = vld [vmem:[#allocation5 + $0xa8] sm:$0xff]
    %v164 = vld [vmem:[#allocation5 + $0xb0] sm:$0xff]
    %v165 = vld [vmem:[#allocation5 + $0xb8] sm:$0xff]
    %v166 = vld [vmem:[#allocation5 + $0xc0] sm:$0xff]
    %v167 = vld [vmem:[#allocation5 + $0xc8] sm:$0xff]
    %v168 = vld [vmem:[#allocation5 + $0xd0] sm:$0xff]
    %v169 = vld [vmem:[#allocation5 + $0xd8] sm:$0xff]
    %v170 = vld [vmem:[#allocation5 + $0xe0] sm:$0xff]
    %v171 = vld [vmem:[#allocation5 + $0xe8] sm:$0xff]
    %v172 = vld [vmem:[#allocation5 + $0xf0] sm:$0xff]
    %v173 = vld [vmem:[#allocation5 + $0xf8] sm:$0xff]
    %v174 = vld [vmem:[#allocation5 + $0x100] sm:$0xff]
    %v175 = vld [vmem:[#allocation5 + $0x108] sm:$0xff]
    %v176 = vld [vmem:[#allocation5 + $0x110] sm:$0xff]
    %v177 = vld [vmem:[#allocation5 + $0x118] sm:$0xff]
    %v178 = vld [vmem:[#allocation5 + $0x120] sm:$0xff]
    %v179 = vld [vmem:[#allocation5 + $0x128] sm:$0xff]
    %v180 = vld [vmem:[#allocation5 + $0x130] sm:$0xff]
    %v181 = vld [vmem:[#allocation5 + $0x138] sm:$0xff]
    %v182 = vld [vmem:[#allocation5 + $0x140] sm:$0xff]
    %v183 = vld [vmem:[#allocation5 + $0x148] sm:$0xff]
    %v184 = vld [vmem:[#allocation5 + $0x150] sm:$0xff]
    %v185 = vld [vmem:[#allocation5 + $0x158] sm:$0xff]
    %v186 = vld [vmem:[#allocation5 + $0x160] sm:$0xff]
    %v187 = vld [vmem:[#allocation5 + $0x168] sm:$0xff]
    %v188 = vld [vmem:[#allocation5 + $0x170] sm:$0xff]
    %v189 = vld [vmem:[#allocation5 + $0x178] sm:$0xff]
    %v190 = vld [vmem:[#allocation5 + $0x180] sm:$0xff]
    %v191 = vld [vmem:[#allocation5 + $0x188] sm:$0xff]
    %v192 = vld [vmem:[#allocation5 + $0x190] sm:$0xff]
    %v193 = vld [vmem:[#allocation5 + $0x198] sm:$0xff]
    %v194 = vld [vmem:[#allocation5 + $0x1a0] sm:$0xff]
    %v195 = vld [vmem:[#allocation5 + $0x1a8] sm:$0xff]
    %v196 = vld [vmem:[#allocation5 + $0x1b0] sm:$0xff]
    %v197 = vld [vmem:[#allocation5 + $0x1b8] sm:$0xff]
    %v198 = vld [vmem:[#allocation5 + $0x1c0] sm:$0xff]
    %v199 = vld [vmem:[#allocation5 + $0x1c8] sm:$0xff]
    %v200 = vld [vmem:[#allocation5 + $0x1d0] sm:$0xff]
    %v201 = vld [vmem:[#allocation5 + $0x1d8] sm:$0xff]
    %v202 = vld [vmem:[#allocation5 + $0x1e0] sm:$0xff]
    %v203 = vld [vmem:[#allocation5 + $0x1e8] sm:$0xff]
    %v204 = vld [vmem:[#allocation5 + $0x1f0] sm:$0xff]
    %v205 = vld [vmem:[#allocation5 + $0x1f8] sm:$0xff]
    %v206 = vld [vmem:[#allocation5 + $0x200] sm:$0xff]
    %v207 = vld [vmem:[#allocation5 + $0x208] sm:$0xff]
    %v208 = vld [vmem:[#allocation5 + $0x210] sm:$0xff]
    %v209 = vld [vmem:[#allocation5 + $0x218] sm:$0xff]
    %v210 = vld [vmem:[#allocation5 + $0x220] sm:$0xff]
    %v211 = vld [vmem:[#allocation5 + $0x228] sm:$0xff]
    %v212 = vld [vmem:[#allocation5 + $0x230] sm:$0xff]
    %v213 = vld [vmem:[#allocation5 + $0x238] sm:$0xff]
    %v214 = vld [vmem:[#allocation5 + $0x240] sm:$0xff]
    %v215 = vld [vmem:[#allocation5 + $0x248] sm:$0xff]
    %v216 = vld [vmem:[#allocation5 + $0x250] sm:$0xff]
    %v217 = vld [vmem:[#allocation5 + $0x258] sm:$0xff]
    %v218 = vld [vmem:[#allocation5 + $0x260] sm:$0xff]
    %v219 = vld [vmem:[#allocation5 + $0x268] sm:$0xff]
    %v220 = vld [vmem:[#allocation5 + $0x270] sm:$0xff]
    %v221 = vld [vmem:[#allocation5 + $0x278] sm:$0xff]
    %v222 = vld [vmem:[#allocation5 + $0x280] sm:$0xff]
    %v223 = vld [vmem:[#allocation5 + $0x288] sm:$0xff]
    %v224 = vld [vmem:[#allocation5 + $0x290] sm:$0xff]
    %v225 = vld [vmem:[#allocation5 + $0x298] sm:$0xff]
    %v226 = vld [vmem:[#allocation5 + $0x2a0] sm:$0xff]
    %v227 = vld [vmem:[#allocation5 + $0x2a8] sm:$0xff]
    %v228 = vld [vmem:[#allocation5 + $0x2b0] sm:$0xff]
    %v229 = vld [vmem:[#allocation5 + $0x2b8] sm:$0xff]
    %v230 = vld [vmem:[#allocation5 + $0x2c0] sm:$0xff]
    %v231 = vld [vmem:[#allocation5 + $0x2c8] sm:$0xff]
    %v232 = vld [vmem:[#allocation5 + $0x2d0] sm:$0xff]
    %v233 = vld [vmem:[#allocation5 + $0x2d8] sm:$0xff]
    %v234 = vld [vmem:[#allocation5 + $0x2e0] sm:$0xff]
    %v235 = vld [vmem:[#allocation5 + $0x2e8] sm:$0xff]
    %v236 = vld [vmem:[#allocation5 + $0x2f0] sm:$0xff]
    %v237 = vld [vmem:[#allocation5 + $0x2f8] sm:$0xff]
    %v238 = vld [vmem:[#allocation5 + $0x300] sm:$0xff]
    %v239 = vld [vmem:[#allocation5 + $0x308] sm:$0xff]
    %v240 = vld [vmem:[#allocation5 + $0x310] sm:$0xff]
    %v241 = vld [vmem:[#allocation5 + $0x318] sm:$0xff]
    %v242 = vld [vmem:[#allocation5 + $0x320] sm:$0xff]
    %v243 = vld [vmem:[#allocation5 + $0x328] sm:$0xff]
    %v244 = vld [vmem:[#allocation5 + $0x330] sm:$0xff]
    %v245 = vld [vmem:[#allocation5 + $0x338] sm:$0xff]
    %v246 = vld [vmem:[#allocation5 + $0x340] sm:$0xff]
    %v247 = vld [vmem:[#allocation5 + $0x348] sm:$0xff]
    %v248 = vld [vmem:[#allocation5 + $0x350] sm:$0xff]
    %v249 = vld [vmem:[#allocation5 + $0x358] sm:$0xff]
    %v250 = vld [vmem:[#allocation5 + $0x360] sm:$0xff]
    %v251 = vld [vmem:[#allocation5 + $0x368] sm:$0xff]
    %v252 = vld [vmem:[#allocation5 + $0x370] sm:$0xff]
    %v253 = vld [vmem:[#allocation5 + $0x378] sm:$0xff]
    %v254 = vld [vmem:[#allocation5 + $0x380] sm:$0xff]
    %v255 = vld [vmem:[#allocation5 + $0x388] sm:$0xff]
    %v256 = vld [vmem:[#allocation5 + $0x390] sm:$0xff]
    %v257 = vld [vmem:[#allocation5 + $0x398] sm:$0xff]
    %v258 = vld [vmem:[#allocation5 + $0x3a0] sm:$0xff]
    %v259 = vld [vmem:[#allocation5 + $0x3a8] sm:$0xff]
    %v260 = vld [vmem:[#allocation5 + $0x3b0] sm:$0xff]
    %v261 = vld [vmem:[#allocation5 + $0x3b8] sm:$0xff]
    %v262 = vld [vmem:[#allocation5 + $0x3c0] sm:$0xff]
    %v263 = vld [vmem:[#allocation5 + $0x3c8] sm:$0xff]
    %v264 = vld [vmem:[#allocation5 + $0x3d0] sm:$0xff]
    %v265 = vld [vmem:[#allocation5 + $0x3d8] sm:$0xff]
    %v266 = vld [vmem:[#allocation5 + $0x3e0] sm:$0xff]
    %v267 = vld [vmem:[#allocation5 + $0x3e8] sm:$0xff]
    %v268 = vld [vmem:[#allocation5 + $0x3f0] sm:$0xff]
    %v269 = vld [vmem:[#allocation5 + $0x3f8] sm:$0xff]
    %v270 = vld [vmem:[%s2] sm:$0x3]
    %v272 = vlaneseq
    %v273 = vshrl.u32 %v272, 7
    %v274 = vsub.s32 0, %v273
    %v275 = vrot.slane %v270, %v274
    %v276 = vlaneseq
    %v277 = vshrl.u32 %v276, 7
    %v278 = vsub.s32 1, %v277
    %v279 = vrot.slane %v270, %v278
    %282 = vmatprep.subr.mxu0 %v143
    %283 = vmatpush1.msra.mxu0 %v142
    %284 = vmatprep.subr.mxu0 %v145
    %285 = vmatpush1.msra.mxu0 %v144
    %286 = vmatprep.subr.mxu0 %v147
    %287 = vmatpush1.msra.mxu0 %v146
    %288 = vmatprep.subr.mxu0 %v149
    %289 = vmatpush1.msra.mxu0 %v148
    %290 = vmatprep.subr.mxu0 %v151
    %291 = vmatpush1.msra.mxu0 %v150
    %292 = vmatprep.subr.mxu0 %v153
    %293 = vmatpush1.msra.mxu0 %v152
    %294 = vmatprep.subr.mxu0 %v155
    %295 = vmatpush1.msra.mxu0 %v154
    %296 = vmatprep.subr.mxu0 %v157
    %297 = vmatpush1.msra.mxu0 %v156
    %298 = vmatprep.subr.mxu0 %v159
    %299 = vmatpush1.msra.mxu0 %v158
    %300 = vmatprep.subr.mxu0 %v161
    %301 = vmatpush1.msra.mxu0 %v160
    %302 = vmatprep.subr.mxu0 %v163
    %303 = vmatpush1.msra.mxu0 %v162
    %304 = vmatprep.subr.mxu0 %v165
    %305 = vmatpush1.msra.mxu0 %v164
    %306 = vmatprep.subr.mxu0 %v167
    %307 = vmatpush1.msra.mxu0 %v166
    %308 = vmatprep.subr.mxu0 %v169
    %309 = vmatpush1.msra.mxu0 %v168
    %310 = vmatprep.subr.mxu0 %v171
    %311 = vmatpush1.msra.mxu0 %v170
    %312 = vmatprep.subr.mxu0 %v173
    %313 = vmatpush1.msra.mxu0 %v172
    %314 = vmatprep.subr.mxu0 %v175
    %315 = vmatpush1.msra.mxu0 %v174
    %316 = vmatprep.subr.mxu0 %v177
    %317 = vmatpush1.msra.mxu0 %v176
    %318 = vmatprep.subr.mxu0 %v179
    %319 = vmatpush1.msra.mxu0 %v178
    %320 = vmatprep.subr.mxu0 %v181
    %321 = vmatpush1.msra.mxu0 %v180
    %322 = vmatprep.subr.mxu0 %v183
    %323 = vmatpush1.msra.mxu0 %v182
    %324 = vmatprep.subr.mxu0 %v185
    %325 = vmatpush1.msra.mxu0 %v184
    %326 = vmatprep.subr.mxu0 %v187
    %327 = vmatpush1.msra.mxu0 %v186
    %328 = vmatprep.subr.mxu0 %v189
    %329 = vmatpush1.msra.mxu0 %v188
    %330 = vmatprep.subr.mxu0 %v191
    %331 = vmatpush1.msra.mxu0 %v190
    %332 = vmatprep.subr.mxu0 %v193
    %333 = vmatpush1.msra.mxu0 %v192
    %334 = vmatprep.subr.mxu0 %v195
    %335 = vmatpush1.msra.mxu0 %v194
    %336 = vmatprep.subr.mxu0 %v197
    %337 = vmatpush1.msra.mxu0 %v196
    %338 = vmatprep.subr.mxu0 %v199
    %339 = vmatpush1.msra.mxu0 %v198
    %340 = vmatprep.subr.mxu0 %v201
    %341 = vmatpush1.msra.mxu0 %v200
    %342 = vmatprep.subr.mxu0 %v203
    %343 = vmatpush1.msra.mxu0 %v202
    %344 = vmatprep.subr.mxu0 %v205
    %345 = vmatpush1.msra.mxu0 %v204
    %346 = vmatprep.mubr.f32.mxu0 %v139
    %347 = vmatmul.mubr.f32.gmra.mrb[0].mxu0 %v138
    %v348 = vpop.f32.mrb[0].mxu0
    %v349 = vadd.f32 %v275, %v348
    %v350 = vpop.f32.mrb[0].mxu0
    %v351 = vadd.f32 %v279, %v350
    %352 = vdwg.mxu0
    %353 = vmatprep.subr.mxu0 %v207
    %354 = vmatpush1.msra.mxu0 %v206
    %355 = vmatprep.subr.mxu0 %v209
    %356 = vmatpush1.msra.mxu0 %v208
    %357 = vmatprep.subr.mxu0 %v211
    %358 = vmatpush1.msra.mxu0 %v210
    %359 = vmatprep.subr.mxu0 %v213
    %360 = vmatpush1.msra.mxu0 %v212
    %361 = vmatprep.subr.mxu0 %v215
    %362 = vmatpush1.msra.mxu0 %v214
    %363 = vmatprep.subr.mxu0 %v217
    %364 = vmatpush1.msra.mxu0 %v216
    %365 = vmatprep.subr.mxu0 %v219
    %366 = vmatpush1.msra.mxu0 %v218
    %367 = vmatprep.subr.mxu0 %v221
    %368 = vmatpush1.msra.mxu0 %v220
    %369 = vmatprep.subr.mxu0 %v223
    %370 = vmatpush1.msra.mxu0 %v222
    %371 = vmatprep.subr.mxu0 %v225
    %372 = vmatpush1.msra.mxu0 %v224
    %373 = vmatprep.subr.mxu0 %v227
    %374 = vmatpush1.msra.mxu0 %v226
    %375 = vmatprep.subr.mxu0 %v229
    %376 = vmatpush1.msra.mxu0 %v228
    %377 = vmatprep.subr.mxu0 %v231
    %378 = vmatpush1.msra.mxu0 %v230
    %379 = vmatprep.subr.mxu0 %v233
    %380 = vmatpush1.msra.mxu0 %v232
    %381 = vmatprep.subr.mxu0 %v235
    %382 = vmatpush1.msra.mxu0 %v234
    %383 = vmatprep.subr.mxu0 %v237
    %384 = vmatpush1.msra.mxu0 %v236
    %385 = vmatprep.subr.mxu0 %v239
    %386 = vmatpush1.msra.mxu0 %v238
    %387 = vmatprep.subr.mxu0 %v241
    %388 = vmatpush1.msra.mxu0 %v240
    %389 = vmatprep.subr.mxu0 %v243
    %390 = vmatpush1.msra.mxu0 %v242
    %391 = vmatprep.subr.mxu0 %v245
    %392 = vmatpush1.msra.mxu0 %v244
    %393 = vmatprep.subr.mxu0 %v247
    %394 = vmatpush1.msra.mxu0 %v246
    %395 = vmatprep.subr.mxu0 %v249
    %396 = vmatpush1.msra.mxu0 %v248
    %397 = vmatprep.subr.mxu0 %v251
    %398 = vmatpush1.msra.mxu0 %v250
    %399 = vmatprep.subr.mxu0 %v253
    %400 = vmatpush1.msra.mxu0 %v252
    %401 = vmatprep.subr.mxu0 %v255
    %402 = vmatpush1.msra.mxu0 %v254
    %403 = vmatprep.subr.mxu0 %v257
    %404 = vmatpush1.msra.mxu0 %v256
    %405 = vmatprep.subr.mxu0 %v259
    %406 = vmatpush1.msra.mxu0 %v258
    %407 = vmatprep.subr.mxu0 %v261
    %408 = vmatpush1.msra.mxu0 %v260
    %409 = vmatprep.subr.mxu0 %v263
    %410 = vmatpush1.msra.mxu0 %v262
    %411 = vmatprep.subr.mxu0 %v265
    %412 = vmatpush1.msra.mxu0 %v264
    %413 = vmatprep.subr.mxu0 %v267
    %414 = vmatpush1.msra.mxu0 %v266
    %415 = vmatprep.subr.mxu0 %v269
    %416 = vmatpush1.msra.mxu0 %v268
    %417 = vmatprep.mubr.f32.mxu0 %v141
    %418 = vmatmul.mubr.f32.gmra.mrb[0].mxu0 %v140
    %v419 = vpop.f32.mrb[0].mxu0
    %v420 = vadd.f32 %v349, %v419
    %v421 = vpop.f32.mrb[0].mxu0
    %v422 = vadd.f32 %v351, %v421
    %423 = vdwg.mxu0
    %vm424 = vcmp.ge.f32.partialorder %v420, 0.0
    %vm425 = vcmp.ge.f32.partialorder %v422, 0.0
    %v426 = vmul.f32 %v420, 0.02
    %v427 = vmul.f32 %v422, 0.02
    %v428 = vsel %vm424, %v420, %v426
    %v429 = vsel %vm425, %v422, %v427
    %v430 = vld [vmem:[#allocation7] sm:$0xff]
    %v431 = vld [vmem:[#allocation7 + $0x8] sm:$0xff]
    %v432 = vld [vmem:[#allocation7 + $0x10] sm:$0xff]
    %v433 = vld [vmem:[#allocation7 + $0x18] sm:$0xff]
    %v434 = vld [vmem:[#allocation7 + $0x20] sm:$0xff]
    %v435 = vld [vmem:[#allocation7 + $0x28] sm:$0xff]
    %v436 = vld [vmem:[#allocation7 + $0x30] sm:$0xff]
    %v437 = vld [vmem:[#allocation7 + $0x38] sm:$0xff]
    %v438 = vld [vmem:[#allocation7 + $0x40] sm:$0xff]
    %v439 = vld [vmem:[#allocation7 + $0x48] sm:$0xff]
    %v440 = vld [vmem:[#allocation7 + $0x50] sm:$0xff]
    %v441 = vld [vmem:[#allocation7 + $0x58] sm:$0xff]
    %v442 = vld [vmem:[#allocation7 + $0x60] sm:$0xff]
    %v443 = vld [vmem:[#allocation7 + $0x68] sm:$0xff]
    %v444 = vld [vmem:[#allocation7 + $0x70] sm:$0xff]
    %v445 = vld [vmem:[#allocation7 + $0x78] sm:$0xff]
    %v446 = vld [vmem:[#allocation7 + $0x80] sm:$0xff]
    %v447 = vld [vmem:[#allocation7 + $0x88] sm:$0xff]
    %v448 = vld [vmem:[#allocation7 + $0x90] sm:$0xff]
    %v449 = vld [vmem:[#allocation7 + $0x98] sm:$0xff]
    %v450 = vld [vmem:[#allocation7 + $0xa0] sm:$0xff]
    %v451 = vld [vmem:[#allocation7 + $0xa8] sm:$0xff]
    %v452 = vld [vmem:[#allocation7 + $0xb0] sm:$0xff]
    %v453 = vld [vmem:[#allocation7 + $0xb8] sm:$0xff]
    %v454 = vld [vmem:[#allocation7 + $0xc0] sm:$0xff]
    %v455 = vld [vmem:[#allocation7 + $0xc8] sm:$0xff]
    %v456 = vld [vmem:[#allocation7 + $0xd0] sm:$0xff]
    %v457 = vld [vmem:[#allocation7 + $0xd8] sm:$0xff]
    %v458 = vld [vmem:[#allocation7 + $0xe0] sm:$0xff]
    %v459 = vld [vmem:[#allocation7 + $0xe8] sm:$0xff]
    %v460 = vld [vmem:[#allocation7 + $0xf0] sm:$0xff]
    %v461 = vld [vmem:[#allocation7 + $0xf8] sm:$0xff]
    %v462 = vld [vmem:[%s4] sm:$0x1]
    %v464 = vlaneseq
    %v465 = vshrl.u32 %v464, 7
    %v466 = vsub.s32 0, %v465
    %v467 = vrot.slane %v462, %v466
    %469 = vmatprep.subr.mxu0 0.0
    %470 = vmatpush1.msra.mxu0 %v430
    %471 = vmatprep.subr.mxu0 0.0
    %472 = vmatpush1.msra.mxu0 %v431
    %473 = vmatprep.subr.mxu0 0.0
    %474 = vmatpush1.msra.mxu0 %v432
    %475 = vmatprep.subr.mxu0 0.0
    %476 = vmatpush1.msra.mxu0 %v433
    %477 = vmatprep.subr.mxu0 0.0
    %478 = vmatpush1.msra.mxu0 %v434
    %479 = vmatprep.subr.mxu0 0.0
    %480 = vmatpush1.msra.mxu0 %v435
    %481 = vmatprep.subr.mxu0 0.0
    %482 = vmatpush1.msra.mxu0 %v436
    %483 = vmatprep.subr.mxu0 0.0
    %484 = vmatpush1.msra.mxu0 %v437
    %485 = vmatprep.subr.mxu0 0.0
    %486 = vmatpush1.msra.mxu0 %v438
    %487 = vmatprep.subr.mxu0 0.0
    %488 = vmatpush1.msra.mxu0 %v439
    %489 = vmatprep.subr.mxu0 0.0
    %490 = vmatpush1.msra.mxu0 %v440
    %491 = vmatprep.subr.mxu0 0.0
    %492 = vmatpush1.msra.mxu0 %v441
    %493 = vmatprep.subr.mxu0 0.0
    %494 = vmatpush1.msra.mxu0 %v442
    %495 = vmatprep.subr.mxu0 0.0
    %496 = vmatpush1.msra.mxu0 %v443
    %497 = vmatprep.subr.mxu0 0.0
    %498 = vmatpush1.msra.mxu0 %v444
    %499 = vmatprep.subr.mxu0 0.0
    %500 = vmatpush1.msra.mxu0 %v445
    %501 = vmatprep.subr.mxu0 0.0
    %502 = vmatpush1.msra.mxu0 %v446
    %503 = vmatprep.subr.mxu0 0.0
    %504 = vmatpush1.msra.mxu0 %v447
    %505 = vmatprep.subr.mxu0 0.0
    %506 = vmatpush1.msra.mxu0 %v448
    %507 = vmatprep.subr.mxu0 0.0
    %508 = vmatpush1.msra.mxu0 %v449
    %509 = vmatprep.subr.mxu0 0.0
    %510 = vmatpush1.msra.mxu0 %v450
    %511 = vmatprep.subr.mxu0 0.0
    %512 = vmatpush1.msra.mxu0 %v451
    %513 = vmatprep.subr.mxu0 0.0
    %514 = vmatpush1.msra.mxu0 %v452
    %515 = vmatprep.subr.mxu0 0.0
    %516 = vmatpush1.msra.mxu0 %v453
    %517 = vmatprep.subr.mxu0 0.0
    %518 = vmatpush1.msra.mxu0 %v454
    %519 = vmatprep.subr.mxu0 0.0
    %520 = vmatpush1.msra.mxu0 %v455
    %521 = vmatprep.subr.mxu0 0.0
    %522 = vmatpush1.msra.mxu0 %v456
    %523 = vmatprep.subr.mxu0 0.0
    %524 = vmatpush1.msra.mxu0 %v457
    %525 = vmatprep.subr.mxu0 0.0
    %526 = vmatpush1.msra.mxu0 %v458
    %527 = vmatprep.subr.mxu0 0.0
    %528 = vmatpush1.msra.mxu0 %v459
    %529 = vmatprep.subr.mxu0 0.0
    %530 = vmatpush1.msra.mxu0 %v460
    %531 = vmatprep.subr.mxu0 0.0
    %532 = vmatpush1.msra.mxu0 %v461
    %533 = vmatprep.mubr.f32.mxu0 %v429
    %534 = vmatmul.mubr.f32.gmra.mrb[0].mxu0 %v428
    %v535 = vpop.f32.mrb[0].mxu0
    %v536 = vadd.f32 %v467, %v535
    %v537 = vpop.f32.mrb[0].mxu0
    %538 = vdwg.mxu0
    %vm539 = vcmp.ge.f32.partialorder %v536, 0.0
    %v540 = vmul.f32 %v536, 0.02
    %v541 = vsel %vm539, %v536, %v540
    %v542 = vld [vmem:[#allocation8] sm:$0xff]
    %v543 = vld [vmem:[#allocation8 + $0x8] sm:$0xff]
    %v544 = vld [vmem:[#allocation8 + $0x10] sm:$0xff]
    %v545 = vld [vmem:[#allocation8 + $0x18] sm:$0xff]
    %v546 = vld [vmem:[#allocation8 + $0x20] sm:$0xff]
    %v547 = vld [vmem:[#allocation8 + $0x28] sm:$0xff]
    %v548 = vld [vmem:[#allocation8 + $0x30] sm:$0xff]
    %v549 = vld [vmem:[#allocation8 + $0x38] sm:$0xff]
    %v550 = vld [vmem:[#allocation8 + $0x40] sm:$0xff]
    %v551 = vld [vmem:[#allocation8 + $0x48] sm:$0xff]
    %v552 = vld [vmem:[#allocation8 + $0x50] sm:$0xff]
    %v553 = vld [vmem:[#allocation8 + $0x58] sm:$0xff]
    %v554 = vld [vmem:[#allocation8 + $0x60] sm:$0xff]
    %v555 = vld [vmem:[#allocation8 + $0x68] sm:$0xff]
    %v556 = vld [vmem:[#allocation8 + $0x70] sm:$0xff]
    %v557 = vld [vmem:[#allocation8 + $0x78] sm:$0xff]
    %v558 = vld [vmem:[%s6] sm:$0x1]
    %v560 = vlaneseq
    %v561 = vshrl.u32 %v560, 7
    %v562 = vsub.s32 0, %v561
    %v563 = vrot.slane %v558, %v562
    %565 = vmatprep.subr.mxu0 0.0
    %566 = vmatpush1.msra.mxu0 %v542
    %567 = vmatprep.subr.mxu0 0.0
    %568 = vmatpush1.msra.mxu0 %v543
    %569 = vmatprep.subr.mxu0 0.0
    %570 = vmatpush1.msra.mxu0 %v544
    %571 = vmatprep.subr.mxu0 0.0
    %572 = vmatpush1.msra.mxu0 %v545
    %573 = vmatprep.subr.mxu0 0.0
    %574 = vmatpush1.msra.mxu0 %v546
    %575 = vmatprep.subr.mxu0 0.0
    %576 = vmatpush1.msra.mxu0 %v547
    %577 = vmatprep.subr.mxu0 0.0
    %578 = vmatpush1.msra.mxu0 %v548
    %579 = vmatprep.subr.mxu0 0.0
    %580 = vmatpush1.msra.mxu0 %v549
    %581 = vmatprep.subr.mxu0 0.0
    %582 = vmatpush1.msra.mxu0 %v550
    %583 = vmatprep.subr.mxu0 0.0
    %584 = vmatpush1.msra.mxu0 %v551
    %585 = vmatprep.subr.mxu0 0.0
    %586 = vmatpush1.msra.mxu0 %v552
    %587 = vmatprep.subr.mxu0 0.0
    %588 = vmatpush1.msra.mxu0 %v553
    %589 = vmatprep.subr.mxu0 0.0
    %590 = vmatpush1.msra.mxu0 %v554
    %591 = vmatprep.subr.mxu0 0.0
    %592 = vmatpush1.msra.mxu0 %v555
    %593 = vmatprep.subr.mxu0 0.0
    %594 = vmatpush1.msra.mxu0 %v556
    %595 = vmatprep.subr.mxu0 0.0
    %596 = vmatpush1.msra.mxu0 %v557
    %597 = vmatprep.subr.mxu0 0.0
    %598 = vmatpush1.msra.mxu0 0.0
    %599 = vmatprep.subr.mxu0 0.0
    %600 = vmatpush1.msra.mxu0 0.0
    %601 = vmatprep.subr.mxu0 0.0
    %602 = vmatpush1.msra.mxu0 0.0
    %603 = vmatprep.subr.mxu0 0.0
    %604 = vmatpush1.msra.mxu0 0.0
    %605 = vmatprep.subr.mxu0 0.0
    %606 = vmatpush1.msra.mxu0 0.0
    %607 = vmatprep.subr.mxu0 0.0
    %608 = vmatpush1.msra.mxu0 0.0
    %609 = vmatprep.subr.mxu0 0.0
    %610 = vmatpush1.msra.mxu0 0.0
    %611 = vmatprep.subr.mxu0 0.0
    %612 = vmatpush1.msra.mxu0 0.0
    %613 = vmatprep.subr.mxu0 0.0
    %614 = vmatpush1.msra.mxu0 0.0
    %615 = vmatprep.subr.mxu0 0.0
    %616 = vmatpush1.msra.mxu0 0.0
    %617 = vmatprep.subr.mxu0 0.0
    %618 = vmatpush1.msra.mxu0 0.0
    %619 = vmatprep.subr.mxu0 0.0
    %620 = vmatpush1.msra.mxu0 0.0
    %621 = vmatprep.subr.mxu0 0.0
    %622 = vmatpush1.msra.mxu0 0.0
    %623 = vmatprep.subr.mxu0 0.0
    %624 = vmatpush1.msra.mxu0 0.0
    %625 = vmatprep.subr.mxu0 0.0
    %626 = vmatpush1.msra.mxu0 0.0
    %627 = vmatprep.subr.mxu0 0.0
    %628 = vmatpush1.msra.mxu0 0.0
    %629 = vmatprep.mubr.f32.mxu0 0.0
    %630 = vmatmul.mubr.f32.gmra.mrb[0].mxu0 %v541
    %v631 = vpop.f32.mrb[0].mxu0
    %v632 = vadd.f32 %v563, %v631
    %v633 = vpop.f32.mrb[0].mxu0
    %634 = vdwg.mxu0
    %vm635 = vcmp.ge.f32.partialorder %v632, 0.0
    %v636 = vmul.f32 %v632, 0.02
    %v637 = vsel %vm635, %v632, %v636
    %v638 = vld [vmem:[#allocation10] sm:$0xff]
    %v639 = vld [vmem:[#allocation10 + $0x8] sm:$0xff]
    %v640 = vld [vmem:[#allocation10 + $0x10] sm:$0xff]
    %v641 = vld [vmem:[#allocation10 + $0x18] sm:$0xff]
    %v642 = vld [vmem:[#allocation10 + $0x20] sm:$0xff]
    %v643 = vld [vmem:[#allocation10 + $0x28] sm:$0xff]
    %v644 = vld [vmem:[#allocation10 + $0x30] sm:$0xff]
    %v645 = vld [vmem:[#allocation10 + $0x38] sm:$0xff]
    %v646 = vld [vmem:[#allocation10 + $0x40] sm:$0xff]
    %v647 = vld [vmem:[#allocation10 + $0x48] sm:$0xff]
    %v648 = vld [vmem:[#allocation10 + $0x50] sm:$0xff]
    %v649 = vld [vmem:[#allocation10 + $0x58] sm:$0xff]
    %v650 = vld [vmem:[#allocation10 + $0x60] sm:$0xff]
    %v651 = vld [vmem:[#allocation10 + $0x68] sm:$0xff]
    %v652 = vld [vmem:[#allocation10 + $0x70] sm:$0xff]
    %v653 = vld [vmem:[#allocation10 + $0x78] sm:$0xff]
    %v654 = vld [vmem:[%s8] sm:$0x1]
    %v656 = vlaneseq
    %v657 = vshrl.u32 %v656, 7
    %v658 = vsub.s32 0, %v657
    %v659 = vrot.slane %v654, %v658
    %661 = vmatprep.subr.mxu0 0.0
    %662 = vmatpush1.msra.mxu0 %v638
    %663 = vmatprep.subr.mxu0 0.0
    %664 = vmatpush1.msra.mxu0 %v639
    %665 = vmatprep.subr.mxu0 0.0
    %666 = vmatpush1.msra.mxu0 %v640
    %667 = vmatprep.subr.mxu0 0.0
    %668 = vmatpush1.msra.mxu0 %v641
    %669 = vmatprep.subr.mxu0 0.0
    %670 = vmatpush1.msra.mxu0 %v642
    %671 = vmatprep.subr.mxu0 0.0
    %672 = vmatpush1.msra.mxu0 %v643
    %673 = vmatprep.subr.mxu0 0.0
    %674 = vmatpush1.msra.mxu0 %v644
    %675 = vmatprep.subr.mxu0 0.0
    %676 = vmatpush1.msra.mxu0 %v645
    %677 = vmatprep.subr.mxu0 0.0
    %678 = vmatpush1.msra.mxu0 %v646
    %679 = vmatprep.subr.mxu0 0.0
    %680 = vmatpush1.msra.mxu0 %v647
    %681 = vmatprep.subr.mxu0 0.0
    %682 = vmatpush1.msra.mxu0 %v648
    %683 = vmatprep.subr.mxu0 0.0
    %684 = vmatpush1.msra.mxu0 %v649
    %685 = vmatprep.subr.mxu0 0.0
    %686 = vmatpush1.msra.mxu0 %v650
    %687 = vmatprep.subr.mxu0 0.0
    %688 = vmatpush1.msra.mxu0 %v651
    %689 = vmatprep.subr.mxu0 0.0
    %690 = vmatpush1.msra.mxu0 %v652
    %691 = vmatprep.subr.mxu0 0.0
    %692 = vmatpush1.msra.mxu0 %v653
    %693 = vmatprep.subr.mxu0 0.0
    %694 = vmatpush1.msra.mxu0 0.0
    %695 = vmatprep.subr.mxu0 0.0
    %696 = vmatpush1.msra.mxu0 0.0
    %697 = vmatprep.subr.mxu0 0.0
    %698 = vmatpush1.msra.mxu0 0.0
    %699 = vmatprep.subr.mxu0 0.0
    %700 = vmatpush1.msra.mxu0 0.0
    %701 = vmatprep.subr.mxu0 0.0
    %702 = vmatpush1.msra.mxu0 0.0
    %703 = vmatprep.subr.mxu0 0.0
    %704 = vmatpush1.msra.mxu0 0.0
    %705 = vmatprep.subr.mxu0 0.0
    %706 = vmatpush1.msra.mxu0 0.0
    %707 = vmatprep.subr.mxu0 0.0
    %708 = vmatpush1.msra.mxu0 0.0
    %709 = vmatprep.subr.mxu0 0.0
    %710 = vmatpush1.msra.mxu0 0.0
    %711 = vmatprep.subr.mxu0 0.0
    %712 = vmatpush1.msra.mxu0 0.0
    %713 = vmatprep.subr.mxu0 0.0
    %714 = vmatpush1.msra.mxu0 0.0
    %715 = vmatprep.subr.mxu0 0.0
    %716 = vmatpush1.msra.mxu0 0.0
    %717 = vmatprep.subr.mxu0 0.0
    %718 = vmatpush1.msra.mxu0 0.0
    %719 = vmatprep.subr.mxu0 0.0
    %720 = vmatpush1.msra.mxu0 0.0
    %721 = vmatprep.subr.mxu0 0.0
    %722 = vmatpush1.msra.mxu0 0.0
    %723 = vmatprep.subr.mxu0 0.0
    %724 = vmatpush1.msra.mxu0 0.0
    %725 = vmatprep.mubr.f32.mxu0 0.0
    %726 = vmatmul.mubr.f32.gmra.mrb[0].mxu0 %v637
    %v727 = vpop.f32.mrb[0].mxu0
    %v728 = vadd.f32 %v659, %v727
    %v729 = vpop.f32.mrb[0].mxu0
    %730 = vdwg.mxu0
    %vm731 = vcmp.ge.f32.partialorder %v728, 0.0
    %v732 = vmul.f32 %v728, 0.02
    %v733 = vsel %vm731, %v728, %v732
    %v734 = vld [vmem:[#allocation11] sm:$0xff]
    %v735 = vld [vmem:[#allocation11 + $0x8] sm:$0xff]
    %v736 = vld [vmem:[#allocation11 + $0x10] sm:$0xff]
    %v737 = vld [vmem:[#allocation11 + $0x18] sm:$0xff]
    %v738 = vld [vmem:[#allocation11 + $0x20] sm:$0xff]
    %v739 = vld [vmem:[#allocation11 + $0x28] sm:$0xff]
    %v740 = vld [vmem:[#allocation11 + $0x30] sm:$0xff]
    %v741 = vld [vmem:[#allocation11 + $0x38] sm:$0xff]
    %v742 = vld [vmem:[#allocation11 + $0x40] sm:$0xff]
    %v743 = vld [vmem:[#allocation11 + $0x48] sm:$0xff]
    %v744 = vld [vmem:[#allocation11 + $0x50] sm:$0xff]
    %v745 = vld [vmem:[#allocation11 + $0x58] sm:$0xff]
    %v746 = vld [vmem:[#allocation11 + $0x60] sm:$0xff]
    %v747 = vld [vmem:[#allocation11 + $0x68] sm:$0xff]
    %v748 = vld [vmem:[#allocation11 + $0x70] sm:$0xff]
    %v749 = vld [vmem:[#allocation11 + $0x78] sm:$0xff]
    %v750 = vld [vmem:[%s10] sm:$0x1]
    %v752 = vlaneseq
    %v753 = vshrl.u32 %v752, 7
    %v754 = vsub.s32 0, %v753
    %v755 = vrot.slane %v750, %v754
    %757 = vmatprep.subr.mxu0 0.0
    %758 = vmatpush1.msra.mxu0 %v734
    %759 = vmatprep.subr.mxu0 0.0
    %760 = vmatpush1.msra.mxu0 %v735
    %761 = vmatprep.subr.mxu0 0.0
    %762 = vmatpush1.msra.mxu0 %v736
    %763 = vmatprep.subr.mxu0 0.0
    %764 = vmatpush1.msra.mxu0 %v737
    %765 = vmatprep.subr.mxu0 0.0
    %766 = vmatpush1.msra.mxu0 %v738
    %767 = vmatprep.subr.mxu0 0.0
    %768 = vmatpush1.msra.mxu0 %v739
    %769 = vmatprep.subr.mxu0 0.0
    %770 = vmatpush1.msra.mxu0 %v740
    %771 = vmatprep.subr.mxu0 0.0
    %772 = vmatpush1.msra.mxu0 %v741
    %773 = vmatprep.subr.mxu0 0.0
    %774 = vmatpush1.msra.mxu0 %v742
    %775 = vmatprep.subr.mxu0 0.0
    %776 = vmatpush1.msra.mxu0 %v743
    %777 = vmatprep.subr.mxu0 0.0
    %778 = vmatpush1.msra.mxu0 %v744
    %779 = vmatprep.subr.mxu0 0.0
    %780 = vmatpush1.msra.mxu0 %v745
    %781 = vmatprep.subr.mxu0 0.0
    %782 = vmatpush1.msra.mxu0 %v746
    %783 = vmatprep.subr.mxu0 0.0
    %784 = vmatpush1.msra.mxu0 %v747
    %785 = vmatprep.subr.mxu0 0.0
    %786 = vmatpush1.msra.mxu0 %v748
    %787 = vmatprep.subr.mxu0 0.0
    %788 = vmatpush1.msra.mxu0 %v749
    %789 = vmatprep.subr.mxu0 0.0
    %790 = vmatpush1.msra.mxu0 0.0
    %791 = vmatprep.subr.mxu0 0.0
    %792 = vmatpush1.msra.mxu0 0.0
    %793 = vmatprep.subr.mxu0 0.0
    %794 = vmatpush1.msra.mxu0 0.0
    %795 = vmatprep.subr.mxu0 0.0
    %796 = vmatpush1.msra.mxu0 0.0
    %797 = vmatprep.subr.mxu0 0.0
    %798 = vmatpush1.msra.mxu0 0.0
    %799 = vmatprep.subr.mxu0 0.0
    %800 = vmatpush1.msra.mxu0 0.0
    %801 = vmatprep.subr.mxu0 0.0
    %802 = vmatpush1.msra.mxu0 0.0
    %803 = vmatprep.subr.mxu0 0.0
    %804 = vmatpush1.msra.mxu0 0.0
    %805 = vmatprep.subr.mxu0 0.0
    %806 = vmatpush1.msra.mxu0 0.0
    %807 = vmatprep.subr.mxu0 0.0
    %808 = vmatpush1.msra.mxu0 0.0
    %809 = vmatprep.subr.mxu0 0.0
    %810 = vmatpush1.msra.mxu0 0.0
    %811 = vmatprep.subr.mxu0 0.0
    %812 = vmatpush1.msra.mxu0 0.0
    %813 = vmatprep.subr.mxu0 0.0
    %814 = vmatpush1.msra.mxu0 0.0
    %815 = vmatprep.subr.mxu0 0.0
    %816 = vmatpush1.msra.mxu0 0.0
    %817 = vmatprep.subr.mxu0 0.0
    %818 = vmatpush1.msra.mxu0 0.0
    %819 = vmatprep.subr.mxu0 0.0
    %820 = vmatpush1.msra.mxu0 0.0
    %821 = vmatprep.mubr.f32.mxu0 0.0
    %822 = vmatmul.mubr.f32.gmra.mrb[0].mxu0 %v733
    %v823 = vpop.f32.mrb[0].mxu0
    %v824 = vadd.f32 %v755, %v823
    %v825 = vpop.f32.mrb[0].mxu0
    %826 = vdwg.mxu0
    %vm827 = vcmp.ge.f32.partialorder %v824, 0.0
    %v828 = vmul.f32 %v824, 0.02
    %v829 = vsel %vm827, %v824, %v828
    %v830 = vld [vmem:[#allocation13] sm:$0xff]
    %v831 = vld [vmem:[#allocation13 + $0x8] sm:$0xff]
    %v832 = vld [vmem:[#allocation13 + $0x10] sm:$0xff]
    %v833 = vld [vmem:[#allocation13 + $0x18] sm:$0xff]
    %v834 = vld [vmem:[#allocation13 + $0x20] sm:$0xff]
    %v835 = vld [vmem:[#allocation13 + $0x28] sm:$0xff]
    %v836 = vld [vmem:[#allocation13 + $0x30] sm:$0xff]
    %v837 = vld [vmem:[#allocation13 + $0x38] sm:$0xff]
    %v838 = vld [vmem:[#allocation13 + $0x40] sm:$0xff]
    %v839 = vld [vmem:[#allocation13 + $0x48] sm:$0xff]
    %v840 = vld [vmem:[#allocation13 + $0x50] sm:$0xff]
    %v841 = vld [vmem:[#allocation13 + $0x58] sm:$0xff]
    %v842 = vld [vmem:[#allocation13 + $0x60] sm:$0xff]
    %v843 = vld [vmem:[#allocation13 + $0x68] sm:$0xff]
    %v844 = vld [vmem:[#allocation13 + $0x70] sm:$0xff]
    %v845 = vld [vmem:[#allocation13 + $0x78] sm:$0xff]
    %v846 = vld [vmem:[%s12] sm:$0x1]
    %v848 = vlaneseq
    %v849 = vshrl.u32 %v848, 7
    %v850 = vsub.s32 0, %v849
    %v851 = vrot.slane %v846, %v850
    %853 = vmatprep.subr.mxu0 0.0
    %854 = vmatpush1.msra.mxu0 %v830
    %855 = vmatprep.subr.mxu0 0.0
    %856 = vmatpush1.msra.mxu0 %v831
    %857 = vmatprep.subr.mxu0 0.0
    %858 = vmatpush1.msra.mxu0 %v832
    %859 = vmatprep.subr.mxu0 0.0
    %860 = vmatpush1.msra.mxu0 %v833
    %861 = vmatprep.subr.mxu0 0.0
    %862 = vmatpush1.msra.mxu0 %v834
    %863 = vmatprep.subr.mxu0 0.0
    %864 = vmatpush1.msra.mxu0 %v835
    %865 = vmatprep.subr.mxu0 0.0
    %866 = vmatpush1.msra.mxu0 %v836
    %867 = vmatprep.subr.mxu0 0.0
    %868 = vmatpush1.msra.mxu0 %v837
    %869 = vmatprep.subr.mxu0 0.0
    %870 = vmatpush1.msra.mxu0 %v838
    %871 = vmatprep.subr.mxu0 0.0
    %872 = vmatpush1.msra.mxu0 %v839
    %873 = vmatprep.subr.mxu0 0.0
    %874 = vmatpush1.msra.mxu0 %v840
    %875 = vmatprep.subr.mxu0 0.0
    %876 = vmatpush1.msra.mxu0 %v841
    %877 = vmatprep.subr.mxu0 0.0
    %878 = vmatpush1.msra.mxu0 %v842
    %879 = vmatprep.subr.mxu0 0.0
    %880 = vmatpush1.msra.mxu0 %v843
    %881 = vmatprep.subr.mxu0 0.0
    %882 = vmatpush1.msra.mxu0 %v844
    %883 = vmatprep.subr.mxu0 0.0
    %884 = vmatpush1.msra.mxu0 %v845
    %885 = vmatprep.subr.mxu0 0.0
    %886 = vmatpush1.msra.mxu0 0.0
    %887 = vmatprep.subr.mxu0 0.0
    %888 = vmatpush1.msra.mxu0 0.0
    %889 = vmatprep.subr.mxu0 0.0
    %890 = vmatpush1.msra.mxu0 0.0
    %891 = vmatprep.subr.mxu0 0.0
    %892 = vmatpush1.msra.mxu0 0.0
    %893 = vmatprep.subr.mxu0 0.0
    %894 = vmatpush1.msra.mxu0 0.0
    %895 = vmatprep.subr.mxu0 0.0
    %896 = vmatpush1.msra.mxu0 0.0
    %897 = vmatprep.subr.mxu0 0.0
    %898 = vmatpush1.msra.mxu0 0.0
    %899 = vmatprep.subr.mxu0 0.0
    %900 = vmatpush1.msra.mxu0 0.0
    %901 = vmatprep.subr.mxu0 0.0
    %902 = vmatpush1.msra.mxu0 0.0
    %903 = vmatprep.subr.mxu0 0.0
    %904 = vmatpush1.msra.mxu0 0.0
    %905 = vmatprep.subr.mxu0 0.0
    %906 = vmatpush1.msra.mxu0 0.0
    %907 = vmatprep.subr.mxu0 0.0
    %908 = vmatpush1.msra.mxu0 0.0
    %909 = vmatprep.subr.mxu0 0.0
    %910 = vmatpush1.msra.mxu0 0.0
    %911 = vmatprep.subr.mxu0 0.0
    %912 = vmatpush1.msra.mxu0 0.0
    %913 = vmatprep.subr.mxu0 0.0
    %914 = vmatpush1.msra.mxu0 0.0
    %915 = vmatprep.subr.mxu0 0.0
    %916 = vmatpush1.msra.mxu0 0.0
    %917 = vmatprep.mubr.f32.mxu0 0.0
    %918 = vmatmul.mubr.f32.gmra.mrb[0].mxu0 %v829
    %v919 = vpop.f32.mrb[0].mxu0
    %v920 = vadd.f32 %v851, %v919
    %v921 = vpop.f32.mrb[0].mxu0
    %922 = vdwg.mxu0
    %923 = vst [vmem:[#allocation14] sm:$0xff] %v920
    // Predicated region
    $region82: #{tpu_custom_call.1} parent=1 // pred_check
      _
    $region83: #{tpu_custom_call.1} parent=1 // pred_check_branch
      %925 = sbr.rel (0) target = $region85
    $region84: #{tpu_custom_call.1} parent=1 // pred_region
      %s927 = ssub.s32 128, 128
      %928 = vsyncadd [#allocation4], %s927
      %s930 = sshll.u32 [#allocation14], 4
      %s931 = int_to_ptr.vmem [resolvable:$true] %s930
      %933 = dma.vmem_to_hbm [thread:$0]  %s931, 128, %s13, [#allocation4]
    $region85: #{tpu_custom_call.1} parent=1 // pred_fallthru
      _
    // Predicated region
    $region86: #{tpu_custom_call.1} parent=1 // pred_check
      _
    $region87: #{tpu_custom_call.1} parent=1 // pred_check_branch
      %935 = sbr.rel (0) target = $region89
    $region88: #{tpu_custom_call.1} parent=1 // pred_region
      %936 = dma.done [#allocation4], 128
    $region89: #{tpu_custom_call.1} parent=1 // pred_fallthru
      _
    %937 = vsyncpa [#allocation3], 1
    %938 = vsyncpa [#allocation6], 1
    %939 = vsyncpa [#allocation9], 1
    %940 = vsyncpa [#allocation12], 1
    %941 = vsyncpa [#allocation4], 1

</llo_original>
